<compile_context>
chip_gen: v6e
topology: v6e:2x2x1
jax: 0.10.0
libtpu: 0.0.40
codegen_flags: <defaults>
</compile_context>

<pallas_src>
import math

import jax
import jax.numpy as jnp
from jax.experimental import pallas as pl
from jax.experimental.pallas import tpu as pltpu


def _mul_kernel(x_ref, y_ref, o_ref):
    # In-kernel promotion: mixed-dtype multiply rides the VPU slot for free in
    # this DMA-bound kernel; cast to the output dtype on store.
    o_ref[...] = (x_ref[...] * y_ref[...]).astype(o_ref.dtype)


def pallas_mul(x: jax.Array, y: jax.Array) -> jax.Array:
    assert x.shape == y.shape, "torch.mul here is used elementwise on equal shapes"
    out_dtype = jnp.result_type(x.dtype, y.dtype)
    orig_shape = x.shape
    total = int(math.prod(orig_shape)) if x.ndim else 1

    # Pick the widest lane dim (multiple of 128) that divides the element count
    # so large contiguous arrays reshape for free (no pad copy). Fall back to
    # 128 + padding for tiny / odd sizes (e.g. the 4x4 spec case).
    lane = 128
    for cand in (2048, 1024, 512, 256, 128):
        if total >= cand and total % cand == 0:
            lane = cand
            break

    padded = pl.cdiv(total, lane) * lane
    xf = x.reshape(-1)
    yf = y.reshape(-1)
    if padded != total:
        xf = jnp.pad(xf, (0, padded - total))
        yf = jnp.pad(yf, (0, padded - total))
    rows = padded // lane
    x2 = xf.reshape(rows, lane)
    y2 = yf.reshape(rows, lane)

    # Size row-tiles for ~2 MiB per stream per pipeline buffer (safe on v7x's
    # smaller VMEM, still big enough to sit near the HBM roofline on v5e/v6e).
    bytes_per_elem = max(
        jnp.dtype(x.dtype).itemsize,
        jnp.dtype(y.dtype).itemsize,
        jnp.dtype(out_dtype).itemsize,
    )
    target_block_bytes = 2 * 1024 * 1024
    tile_m = max(8, (target_block_bytes // (lane * bytes_per_elem)) // 8 * 8)
    if rows <= tile_m:
        # Full first dim -> legal block regardless of 8-divisibility.
        tile_m = rows
    grid = (pl.cdiv(rows, tile_m),)

    out2 = pl.pallas_call(
        _mul_kernel,
        out_shape=jax.ShapeDtypeStruct((rows, lane), out_dtype),
        grid=grid,
        in_specs=[
            pl.BlockSpec((tile_m, lane), lambda i: (i, 0)),
            pl.BlockSpec((tile_m, lane), lambda i: (i, 0)),
        ],
        out_specs=pl.BlockSpec((tile_m, lane), lambda i: (i, 0)),
        compiler_params=pltpu.CompilerParams(
            dimension_semantics=("parallel",),  # v7x: shard rows across both TCs
        ),
    )(x2, y2)

    return out2.reshape(-1)[:total].reshape(orig_shape)


if __name__ == "__main__":
    key = jax.random.PRNGKey(0)
    kx, ky, ka, kb = jax.random.split(key, 4)

    # Spec-sized case: (4, 4) elementwise multiply.
    x = jax.random.normal(kx, (4, 4), dtype=jnp.float32)
    y = jax.random.normal(ky, (4, 4), dtype=jnp.float32)
    out = pallas_mul(x, y)
    jax.block_until_ready(out)
    assert out.shape == (4, 4) and out.dtype == jnp.float32
    assert jnp.allclose(out, x * y, atol=1e-6, rtol=1e-6), "mismatch vs reference (4,4)"

    # Larger mixed-dtype case to exercise the tiled / lane-dense path and
    # in-kernel promotion (bf16 * f32 -> f32).
    a = jax.random.normal(ka, (512, 384), dtype=jnp.bfloat16)
    b = jax.random.normal(kb, (512, 384), dtype=jnp.float32)
    out2 = pallas_mul(a, b)
    jax.block_until_ready(out2)
    ref2 = a.astype(jnp.float32) * b
    assert out2.dtype == jnp.float32
    assert jnp.allclose(out2, ref2, atol=1e-2, rtol=1e-2), "mismatch vs reference (512,384)"

    print("KERNEL_OK")
</pallas_src>

<mosaic_0001>
module attributes {stable_mosaic.version = 11 : i64} {
  func.func @_mul_kernel(%arg0: i32, %arg1: memref<1x128xf32, #tpu.memory_space<vmem>>, %arg2: memref<1x128xf32, #tpu.memory_space<vmem>>, %arg3: memref<1x128xf32, #tpu.memory_space<vmem>>) attributes {dimension_semantics = [#tpu.dimension_semantics<parallel>], iteration_bounds = array<i64: 1>, scalar_prefetch = 0 : i64, scratch_operands = 0 : i64, tpu.core_type = #tpu.core_type<tc>, window_params = [{transform_indices = @transform_0, window_bounds = array<i64: 1, 128>}, {transform_indices = @transform_1, window_bounds = array<i64: 1, 128>}, {transform_indices = @transform_2, window_bounds = array<i64: 1, 128>}]} {
    %c0 = arith.constant 0 : index
    %c0_0 = arith.constant 0 : index
    %0 = vector.load %arg1[%c0, %c0_0] : memref<1x128xf32, #tpu.memory_space<vmem>>, vector<1x128xf32>
    %c0_1 = arith.constant 0 : index
    %c0_2 = arith.constant 0 : index
    %1 = vector.load %arg2[%c0_1, %c0_2] : memref<1x128xf32, #tpu.memory_space<vmem>>, vector<1x128xf32>
    %2 = arith.mulf %0, %1 : vector<1x128xf32>
    %c0_3 = arith.constant 0 : index
    %c0_4 = arith.constant 0 : index
    %3 = vector.load %arg3[%c0_3, %c0_4] : memref<1x128xf32, #tpu.memory_space<vmem>>, vector<1x128xf32>
    tpu.vector_store %arg3[%c0_3, %c0_4], %2 {strides = array<i32>} : memref<1x128xf32, #tpu.memory_space<vmem>>, vector<1x128xf32>,
    return
  }
  func.func @transform_0(%arg0: i32) -> (i32, i32) {
    %c0_i32 = arith.constant 0 : i32
    %c0_i32_0 = arith.constant 0 : i32
    return %arg0, %c0_i32 : i32, i32
  }
  func.func @transform_1(%arg0: i32) -> (i32, i32) {
    %c0_i32 = arith.constant 0 : i32
    %c0_i32_0 = arith.constant 0 : i32
    return %arg0, %c0_i32 : i32, i32
  }
  func.func @transform_2(%arg0: i32) -> (i32, i32) {
    %c0_i32 = arith.constant 0 : i32
    %c0_i32_0 = arith.constant 0 : i32
    return %arg0, %c0_i32 : i32, i32
  }
}

</mosaic_0001>

<llo_original>
// kernel: tpu_custom_call.1
$region0: #{tpu_custom_call.1}
  #allocation0 [shape = 'u32[]', space=smem, size = 0x4, offset = 0x4, fixed_abs, tag = 'smem constant byte address 0x4 - core index']
  #allocation1 [shape = 'u32[144,128]{1,0:T(1,128)}', space=vmem, size = 0x12000, scoped, tag = 'internal scratch']
  %s0 = inlined_call_operand.hbm [shape: f32[1,128], index: 0, kind: input, shape index: {}]
  %s1 = inlined_call_operand.vmem [shape: f32[1,128], index: 1, kind: input, shape index: {}]
  %s2 = inlined_call_operand.hbm [shape: f32[1,128], index: 2, kind: output, shape index: {}]
  %s3 = sld [smem:[#allocation0]]
  $region22: #{tpu_custom_call.1} parent=0
    _
  %s5 = ssub.s32 1, %s3
  %s6 = scalar_select 0, %s5, %s3
  $region1: #{tpu_custom_call.1} parent=0
    #allocation2 [shape = 'u8[512]{0}', space=vmem, size = 0x400, scoped, tag = 'input window, operand 0, single buffered']
    #allocation3 [shape = 's32[1]{0}', space=sflag, size = 0x4, scoped, tag = 'scoped memory for tpu_custom_call.1']
    #allocation4 [shape = 's32[1]{0}', space=sflag, size = 0x4, scoped, tag = 'scoped memory for tpu_custom_call.1']
    #allocation5 [shape = 'u8[512]{0}', space=vmem, size = 0x400, scoped, tag = 'output window, operand 0, single buffered']
    %7 = vsyncpa [#allocation3], 0
    %8 = vsyncpa [#allocation4], 0
    // Predicated region
    $region2: #{tpu_custom_call.1} parent=1 // pred_check
      _
    $region3: #{tpu_custom_call.1} parent=1 // pred_check_branch
      %10 = sbr.rel (0) target = $region5
    $region4: #{tpu_custom_call.1} parent=1 // pred_region
      %s12 = ssub.s32 16, 16
      %13 = vsyncadd [#allocation3], %s12
      %s15 = sshll.u32 [#allocation2], 4
      %s16 = int_to_ptr.vmem [resolvable:$true] %s15
      %18 = dma.hbm_to_vmem [thread:$0]  %s0, 16, %s16, [#allocation3]
    $region5: #{tpu_custom_call.1} parent=1 // pred_fallthru
      _
    // Predicated region
    $region6: #{tpu_custom_call.1} parent=1 // pred_check
      _
    $region7: #{tpu_custom_call.1} parent=1 // pred_check_branch
      %20 = sbr.rel (0) target = $region9
    $region8: #{tpu_custom_call.1} parent=1 // pred_region
      _
    $region9: #{tpu_custom_call.1} parent=1 // pred_fallthru
      _
    // Predicated region
    $region10: #{tpu_custom_call.1} parent=1 // pred_check
      _
    $region11: #{tpu_custom_call.1} parent=1 // pred_check_branch
      %22 = sbr.rel (0) target = $region13
    $region12: #{tpu_custom_call.1} parent=1 // pred_region
      %23 = dma.done [#allocation3], 16
    $region13: #{tpu_custom_call.1} parent=1 // pred_fallthru
      _
    %v24 = vld [vmem:[#allocation2] sm:$0x1]
    %v25 = vld [vmem:[%s1] sm:$0x1]
    %v26 = vmul.f32 %v24, %v25
    %27 = vst [vmem:[#allocation5] sm:$0x1] %v26
    // Predicated region
    $region14: #{tpu_custom_call.1} parent=1 // pred_check
      _
    $region15: #{tpu_custom_call.1} parent=1 // pred_check_branch
      %29 = sbr.rel (0) target = $region17
    $region16: #{tpu_custom_call.1} parent=1 // pred_region
      %s31 = ssub.s32 16, 16
      %32 = vsyncadd [#allocation4], %s31
      %s34 = sshll.u32 [#allocation5], 4
      %s35 = int_to_ptr.vmem [resolvable:$true] %s34
      %37 = dma.vmem_to_hbm [thread:$0]  %s35, 16, %s2, [#allocation4]
    $region17: #{tpu_custom_call.1} parent=1 // pred_fallthru
      _
    // Predicated region
    $region18: #{tpu_custom_call.1} parent=1 // pred_check
      _
    $region19: #{tpu_custom_call.1} parent=1 // pred_check_branch
      %39 = sbr.rel (0) target = $region21
    $region20: #{tpu_custom_call.1} parent=1 // pred_region
      %40 = dma.done [#allocation4], 16
    $region21: #{tpu_custom_call.1} parent=1 // pred_fallthru
      _
    %41 = vsyncpa [#allocation3], 1
    %42 = vsyncpa [#allocation4], 1

</llo_original>
